<compile_context>
chip_gen: v6e
topology: v6e:2x2x1
jax: 0.10.0
libtpu: 0.0.40
codegen_flags: <defaults>
</compile_context>

<pallas_src>
import math

import jax
import jax.numpy as jnp
from jax.experimental import pallas as pl
from jax.experimental.pallas import tpu as pltpu


def _zmodelf_kernel(xc_ref, geff_ref, xf_ref, out_ref):
    # xc_ref   : (b_tile, A, T)  -- streamed, natural layout (T on lanes)
    # geff_ref : (A, T)          -- VMEM-resident across the whole grid
    # xf_ref   : (b_tile, A)
    # out_ref  : (b_tile, A)     -- lane-dense store (A on lanes)
    xc = xc_ref[...].astype(jnp.float32)
    geff = geff_ref[...].astype(jnp.float32)
    res = jnp.sum(xc * geff, axis=-1)                       # (b_tile, A)
    out_ref[...] = jnp.log(1.0 + xf_ref[...] + res)


def zmodelf_forward(
    x_c,
    x_f,
    weight0,
    weight1,
    *,
    batch_block=None,
    stream_dtype=None,
    xc_buffer_budget_bytes=4 * 1024 * 1024,
    vmem_limit_bytes=32 * 1024 * 1024,
):
    """Pallas implementation of ZModelF.forward -> {'preds': ...}.

    x_c: (B, A, T) float, x_f: (B, A), weight0: (1, 1, T-1), weight1: (1, A, T-1).
    """
    B, A, T = x_c.shape
    assert weight0.shape == (1, 1, T - 1)
    assert weight1.shape == (1, A, T - 1)
    assert x_f.shape == (B, A)

    f32 = jnp.float32
    in_dtype = f32 if stream_dtype is None else stream_dtype
    in_bytes = jnp.dtype(in_dtype).itemsize

    # ---- hoisted gate + telescoped effective weights (tiny: (A, T), runs once) ----
    g = jax.nn.sigmoid(weight0[0].astype(f32) + weight1[0].astype(f32))   # (A, T-1)
    geff = jnp.concatenate(
        [-g[:, :1], g[:, :-1] - g[:, 1:], g[:, -1:]], axis=1)             # (A, T)
    geff = geff.astype(in_dtype)

    xc = x_c.astype(in_dtype)            # natural (B, A, T); no transpose, no pad
    xf = x_f.astype(f32)                 # (B, A)

    # ---- batch-tile selection (VMEM aware: T pads to 128 lanes in VMEM) ----
    a_pad = ((A + 7) // 8) * 8
    lane_t = ((T + 127) // 128) * 128
    bytes_per_batch_row = a_pad * lane_t * in_bytes          # VMEM cost of one b-row
    if B <= 8:
        b_tile = B                                           # whole batch in one block
    else:
        b_tile = max(1, min(B, xc_buffer_budget_bytes // bytes_per_batch_row))
        if batch_block is not None:
            b_tile = max(1, min(b_tile, batch_block))
        # >= 2 grid blocks so both v7x TensorCores get work.
        b_tile = min(b_tile, pl.cdiv(B, 2))
        # (8,128) rule for the 2-D x_f / out blocks: sublane dim multiple of 8.
        b_tile = max(8, (b_tile // 8) * 8)
    grid = (pl.cdiv(B, b_tile),)

    cost = pl.CostEstimate(
        flops=2 * B * A * T + 2 * B * A,
        transcendentals=B * A,
        bytes_accessed=B * A * T * in_bytes + A * T * in_bytes + 2 * B * A * 4,
    )

    out = pl.pallas_call(
        _zmodelf_kernel,
        out_shape=jax.ShapeDtypeStruct((B, A), f32),
        grid=grid,
        in_specs=[
            pl.BlockSpec((b_tile, A, T), lambda i: (i, 0, 0)),   # x_c (streamed)
            pl.BlockSpec((A, T), lambda i: (0, 0)),              # geff (resident)
            pl.BlockSpec((b_tile, A), lambda i: (i, 0)),         # x_f
        ],
        out_specs=pl.BlockSpec((b_tile, A), lambda i: (i, 0)),
        compiler_params=pltpu.CompilerParams(
            dimension_semantics=("parallel",),
            vmem_limit_bytes=vmem_limit_bytes,
        ),
        cost_estimate=cost,
    )(xc, geff, xf)

    return {"preds": out}


def _kaiming_uniform(key, shape, a=math.sqrt(5)):
    # torch.nn.init.kaiming_uniform_ with fan_in = shape[1] * prod(shape[2:])
    fan_in = shape[1] * math.prod(shape[2:]) if len(shape) > 1 else shape[0]
    gain = math.sqrt(2.0 / (1.0 + a * a))
    bound = gain * math.sqrt(3.0 / fan_in)
    return jax.random.uniform(key, shape, jnp.float32, -bound, bound)


if __name__ == "__main__":
    # Small synthetic shapes consistent with the module:
    #   hist_len = 14 -> time window T = 14, weights over T-1 = 13
    #   n_areas  = 8, batch = 16 (gives a 2-block "parallel" grid)
    HIST_LEN = 14
    N_AREAS = 8
    BATCH = 16

    key = jax.random.PRNGKey(0)
    k_xc, k_xf, k_w0, k_w1 = jax.random.split(key, 4)

    # Deterministic parameter init (PrLayer2.reset_parameters equivalent).
    weight0 = _kaiming_uniform(k_w0, (1, 1, HIST_LEN - 1))
    weight1 = _kaiming_uniform(k_w1, (1, N_AREAS, HIST_LEN - 1))

    # x_c mimics log(1 + cumulative confirmed cases): non-decreasing in time,
    # so diffs >= 0 and 1 + x_f + res stays > 0 (no NaN / -inf in the check).
    daily = jnp.abs(jax.random.normal(k_xc, (BATCH, N_AREAS, HIST_LEN), jnp.float32))
    x_c = jnp.log1p(jnp.cumsum(daily, axis=2))
    x_f = jnp.abs(jax.random.normal(k_xf, (BATCH, N_AREAS), jnp.float32))

    out = zmodelf_forward(x_c, x_f, weight0, weight1)
    preds = jax.block_until_ready(out["preds"])

    # Pure-JAX reference of the original (un-telescoped) formulation.
    x_diff = x_c[:, :, 1:] - x_c[:, :, :-1]
    res_ref = jnp.sum(x_diff * jax.nn.sigmoid(weight0 + weight1), axis=2)
    preds_ref = jnp.log(1.0 + x_f + res_ref)

    assert preds.shape == (BATCH, N_AREAS)
    assert bool(jnp.all(jnp.isfinite(preds)))
    assert jnp.allclose(preds, preds_ref, atol=1e-5, rtol=1e-5)

    print("KERNEL_OK")
</pallas_src>

<mosaic_0001>
module attributes {stable_mosaic.version = 11 : i64} {
  func.func @_zmodelf_kernel(%arg0: i32, %arg1: memref<8x8x14xf32, #tpu.memory_space<vmem>>, %arg2: memref<8x14xf32, #tpu.memory_space<vmem>>, %arg3: memref<8x8xf32, #tpu.memory_space<vmem>>, %arg4: memref<8x8xf32, #tpu.memory_space<vmem>>) attributes {dimension_semantics = [#tpu.dimension_semantics<parallel>], iteration_bounds = array<i64: 2>, scalar_prefetch = 0 : i64, scratch_operands = 0 : i64, tpu.core_type = #tpu.core_type<tc>, window_params = [{transform_indices = @transform_0, window_bounds = array<i64: 8, 8, 14>}, {pipeline_mode = #tpu.pipeline_mode<synchronous>, transform_indices = @transform_1, window_bounds = array<i64: 8, 14>}, {transform_indices = @transform_2, window_bounds = array<i64: 8, 8>}, {transform_indices = @transform_3, window_bounds = array<i64: 8, 8>}]} {
    %c0 = arith.constant 0 : index
    %c0_0 = arith.constant 0 : index
    %c0_1 = arith.constant 0 : index
    %0 = vector.load %arg1[%c0, %c0_0, %c0_1] : memref<8x8x14xf32, #tpu.memory_space<vmem>>, vector<8x8x14xf32>
    %c0_2 = arith.constant 0 : index
    %c0_3 = arith.constant 0 : index
    %1 = vector.load %arg2[%c0_2, %c0_3] : memref<8x14xf32, #tpu.memory_space<vmem>>, vector<8x14xf32>
    %2 = vector.shape_cast %1 : vector<8x14xf32> to vector<1x8x14xf32>
    %3 = vector.broadcast %2 : vector<1x8x14xf32> to vector<8x8x14xf32>
    %4 = arith.mulf %0, %3 : vector<8x8x14xf32>
    %cst = arith.constant dense<0.000000e+00> : vector<8x8xf32>
    %5 = vector.multi_reduction <add>, %4, %cst [2] : vector<8x8x14xf32> to vector<8x8xf32>
    %c0_4 = arith.constant 0 : index
    %c0_5 = arith.constant 0 : index
    %6 = vector.load %arg3[%c0_4, %c0_5] : memref<8x8xf32, #tpu.memory_space<vmem>>, vector<8x8xf32>
    %cst_6 = arith.constant 1.000000e+00 : f32
    %7 = vector.broadcast %cst_6 : f32 to vector<8x8xf32>
    %8 = arith.addf %7, %6 : vector<8x8xf32>
    %9 = arith.addf %8, %5 : vector<8x8xf32>
    %10 = math.log %9 : vector<8x8xf32>
    %c0_7 = arith.constant 0 : index
    %c0_8 = arith.constant 0 : index
    %11 = vector.load %arg4[%c0_7, %c0_8] : memref<8x8xf32, #tpu.memory_space<vmem>>, vector<8x8xf32>
    tpu.vector_store %arg4[%c0_7, %c0_8], %10 {strides = array<i32>} : memref<8x8xf32, #tpu.memory_space<vmem>>, vector<8x8xf32>,
    return
  }
  func.func @transform_0(%arg0: i32) -> (i32, i32, i32) {
    %c0_i32 = arith.constant 0 : i32
    %c0_i32_0 = arith.constant 0 : i32
    %c0_i32_1 = arith.constant 0 : i32
    return %arg0, %c0_i32, %c0_i32_0 : i32, i32, i32
  }
  func.func @transform_1(%arg0: i32) -> (i32, i32) {
    %c0_i32 = arith.constant 0 : i32
    %c0_i32_0 = arith.constant 0 : i32
    %c0_i32_1 = arith.constant 0 : i32
    return %c0_i32, %c0_i32_0 : i32, i32
  }
  func.func @transform_2(%arg0: i32) -> (i32, i32) {
    %c0_i32 = arith.constant 0 : i32
    %c0_i32_0 = arith.constant 0 : i32
    return %arg0, %c0_i32 : i32, i32
  }
  func.func @transform_3(%arg0: i32) -> (i32, i32) {
    %c0_i32 = arith.constant 0 : i32
    %c0_i32_0 = arith.constant 0 : i32
    return %arg0, %c0_i32 : i32, i32
  }
}

</mosaic_0001>

<llo_original>
// kernel: tpu_custom_call.1
$region0: #{tpu_custom_call.1}
  #allocation0 [shape = 'u32[]', space=smem, size = 0x4, offset = 0x4, fixed_abs, tag = 'smem constant byte address 0x4 - core index']
  #allocation1 [shape = 'u32[144,128]{1,0:T(1,128)}', space=vmem, size = 0x12000, scoped, tag = 'internal scratch']
  %s0 = inlined_call_operand.vmem [shape: f32[16,8,14], index: 0, kind: input, shape index: {}]
  %s1 = inlined_call_operand.vmem [shape: f32[8,14], index: 1, kind: input, shape index: {}]
  %s2 = inlined_call_operand.vmem [shape: f32[16,8], index: 2, kind: input, shape index: {}]
  %s3 = inlined_call_operand.vmem [shape: f32[16,8], index: 3, kind: output, shape index: {}]
  %s4 = sld [smem:[#allocation0]]
  $region45: #{tpu_custom_call.1} parent=0
    _
  %s6 = ssub.s32 1, %s4
  %s7 = scalar_select 0, %s6, %s4
  loop: start=0, step=1, limit=4
  $region2: #{tpu_custom_call.1} parent=0 // loop_pre_header
    _
  $region3: #{tpu_custom_call.1} parent=0 // loop_header
    %s9 = sphi 0, %s13
    %p10 = scmp.ge.s32.totalorder %s9, 4
    %s19 = sphi 0, %s21
    %s22 = sphi 0, %s19
    %s23 = sphi 0, %s22
    %s39 = sphi 0, %s23
    %s43 = sphi 0, %s43
    %s45 = sphi 0, %s43
    %s46 = sphi 0, %s45
    %s60 = sphi 0, %s46
    %s66 = sphi 0, %s68
    %s69 = sphi 0, %s66
    %s70 = sphi 0, %s69
    %s86 = sphi 0, %s70
    %s92 = sphi 0, %s94
    %s95 = sphi 0, %s92
    %s96 = sphi 0, %s95
    %s112 = sphi 0, %s96
  $region4: #{tpu_custom_call.1} parent=0 // loop_header_branch
    %12 = sbr.rel (%p10) target = $region8
  $region5: #{tpu_custom_call.1} parent=0 // loop_body
    %s14 = ssub.s32 %s9, 1
    %s15 = ssub.s32 %s9, 2
    %s16 = sadd.s32 %s9, 1
    %s17 = ssub.s32 %s9, %s16
    %p18 = scmp.eq.s32.totalorder %s17, 0
    %s20 = sadd.s32 %s19, 1
    %s21 = scalar_select %p18, %s19, %s20
    %p24 = pneg %p18
    %p25 = scmp.eq.s32.totalorder %s9, 1
    %p26 = por %p24, %p25
    %p27 = scmp.ne.s32.totalorder %s19, %s22
    %p28 = scmp.eq.s32.totalorder %s9, 0
    %p29 = por %p27, %p28
    %p30 = scmp.ne.s32.totalorder %s19, %s22
    %p31 = scmp.eq.s32.totalorder %s14, 1
    %p32 = por %p30, %p31
    %p33 = scmp.ne.s32.totalorder %s22, %s23
    %p34 = scmp.eq.s32.totalorder %s14, 0
    %p35 = por %p33, %p34
    %p36 = scmp.ne.s32.totalorder %s22, %s23
    %p37 = scmp.eq.s32.totalorder %s15, 1
    %p38 = por %p36, %p37
    %p40 = scmp.ne.s32.totalorder %s23, %s39
    %p41 = scmp.eq.s32.totalorder %s15, 0
    %p42 = por %p40, %p41
    %s44 = sadd.s32 %s43, 1
    %p47 = scmp.eq.s32.totalorder %s9, 1
    %p48 = scmp.ne.s32.totalorder %s43, %s45
    %p49 = scmp.eq.s32.totalorder %s9, 0
    %p50 = por %p48, %p49
    %p51 = scmp.ne.s32.totalorder %s43, %s45
    %p52 = scmp.eq.s32.totalorder %s14, 1
    %p53 = por %p51, %p52
    %p54 = scmp.ne.s32.totalorder %s45, %s46
    %p55 = scmp.eq.s32.totalorder %s14, 0
    %p56 = por %p54, %p55
    %p57 = scmp.ne.s32.totalorder %s45, %s46
    %p58 = scmp.eq.s32.totalorder %s15, 1
    %p59 = por %p57, %p58
    %p61 = scmp.ne.s32.totalorder %s46, %s60
    %p62 = scmp.eq.s32.totalorder %s15, 0
    %p63 = por %p61, %p62
    %s64 = ssub.s32 %s9, %s16
    %p65 = scmp.eq.s32.totalorder %s64, 0
    %s67 = sadd.s32 %s66, 1
    %s68 = scalar_select %p65, %s66, %s67
    %p71 = pneg %p65
    %p72 = scmp.eq.s32.totalorder %s9, 1
    %p73 = por %p71, %p72
    %p74 = scmp.ne.s32.totalorder %s66, %s69
    %p75 = scmp.eq.s32.totalorder %s9, 0
    %p76 = por %p74, %p75
    %p77 = scmp.ne.s32.totalorder %s66, %s69
    %p78 = scmp.eq.s32.totalorder %s14, 1
    %p79 = por %p77, %p78
    %p80 = scmp.ne.s32.totalorder %s69, %s70
    %p81 = scmp.eq.s32.totalorder %s14, 0
    %p82 = por %p80, %p81
    %p83 = scmp.ne.s32.totalorder %s69, %s70
    %p84 = scmp.eq.s32.totalorder %s15, 1
    %p85 = por %p83, %p84
    %p87 = scmp.ne.s32.totalorder %s70, %s86
    %p88 = scmp.eq.s32.totalorder %s15, 0
    %p89 = por %p87, %p88
    %s90 = ssub.s32 %s9, %s16
    %p91 = scmp.eq.s32.totalorder %s90, 0
    %s93 = sadd.s32 %s92, 1
    %s94 = scalar_select %p91, %s92, %s93
    %p97 = pneg %p91
    %p98 = scmp.eq.s32.totalorder %s9, 1
    %p99 = por %p97, %p98
    %p100 = scmp.ne.s32.totalorder %s92, %s95
    %p101 = scmp.eq.s32.totalorder %s9, 0
    %p102 = por %p100, %p101
    %p103 = scmp.ne.s32.totalorder %s92, %s95
    %p104 = scmp.eq.s32.totalorder %s14, 1
    %p105 = por %p103, %p104
    %p106 = scmp.ne.s32.totalorder %s95, %s96
    %p107 = scmp.eq.s32.totalorder %s14, 0
    %p108 = por %p106, %p107
    %p109 = scmp.ne.s32.totalorder %s95, %s96
    %p110 = scmp.eq.s32.totalorder %s15, 1
    %p111 = por %p109, %p110
    %p113 = scmp.ne.s32.totalorder %s96, %s112
    %p114 = scmp.eq.s32.totalorder %s15, 0
    %p115 = por %p113, %p114
    %p116 = scmp.le.s32.totalorder 1, %s9
    %p117 = scmp.lt.s32.totalorder %s9, 3
    %p118 = pnand %p116, %p117
    %p119 = pneg %p118
    // Predicated region
    $region9: #{tpu_custom_call.1} parent=5 // pred_check
      _
    $region10: #{tpu_custom_call.1} parent=5 // pred_check_branch
      %121 = sbr.rel (%p118) target = $region12
    $region11: #{tpu_custom_call.1} parent=5 // pred_region
      %s122 = ssub.s32 %s9, 1
      // Predicated region
      $region13: #{tpu_custom_call.1} parent=11 // pred_check
        %p123 = pneg %p56
      $region14: #{tpu_custom_call.1} parent=11 // pred_check_branch
        %125 = sbr.rel (%p123) target = $region16
      $region15: #{tpu_custom_call.1} parent=11 // pred_region
        _
      $region16: #{tpu_custom_call.1} parent=11 // pred_fallthru
        _
    $region12: #{tpu_custom_call.1} parent=5 // pred_fallthru
      _
    %p126 = scmp.lt.s32.totalorder %s9, 2
    // Predicated region
    $region17: #{tpu_custom_call.1} parent=5 // pred_check
      %p127 = pneg %p126
    $region18: #{tpu_custom_call.1} parent=5 // pred_check_branch
      %129 = sbr.rel (%p127) target = $region20
    $region19: #{tpu_custom_call.1} parent=5 // pred_region
      // Predicated region
      $region21: #{tpu_custom_call.1} parent=19 // pred_check
        %p130 = pneg %p29
      $region22: #{tpu_custom_call.1} parent=19 // pred_check_branch
        %132 = sbr.rel (%p130) target = $region24
      $region23: #{tpu_custom_call.1} parent=19 // pred_region
        %s133 = smul.u32 8, %s9
        %p134 = scmp.lt.s32.totalorder %s133, 15
        %s135 = scalar_select %p134, %s133, 15
        %s136 = smul.addr %s135, 8
        %s137 = scalar_lea.vmem %s0, %s136
        %s138 = smul.u32 8, %s9
      $region24: #{tpu_custom_call.1} parent=19 // pred_fallthru
        _
      // Predicated region
      $region25: #{tpu_custom_call.1} parent=19 // pred_check
        %p139 = pneg %p76
      $region26: #{tpu_custom_call.1} parent=19 // pred_check_branch
        %141 = sbr.rel (%p139) target = $region28
      $region27: #{tpu_custom_call.1} parent=19 // pred_region
        %p142 = scmp.lt.s32.totalorder %s9, 1
        %s143 = scalar_select %p142, %s9, 1
        %s144 = smul.addr %s143, 8
        %s145 = scalar_lea.vmem %s2, %s144
      $region28: #{tpu_custom_call.1} parent=19 // pred_fallthru
        _
    $region20: #{tpu_custom_call.1} parent=5 // pred_fallthru
      _
    %p146 = scmp.le.s32.totalorder 1, %s9
    %p147 = scmp.lt.s32.totalorder %s9, 3
    %p148 = pnand %p146, %p147
    %p149 = pneg %p148
    // Predicated region
    $region29: #{tpu_custom_call.1} parent=5 // pred_check
      _
    $region30: #{tpu_custom_call.1} parent=5 // pred_check_branch
      %151 = sbr.rel (%p148) target = $region32
    $region31: #{tpu_custom_call.1} parent=5 // pred_region
      %s152 = ssub.s32 %s9, 1
      %s153 = smul.u32 8, %s14
      %p154 = scmp.lt.s32.totalorder %s153, 15
      %s155 = scalar_select %p154, %s153, 15
      %s156 = smul.addr %s155, 8
      %s157 = scalar_lea.vmem %s0, %s156
      %p158 = pneg %p35
      %p159 = pneg %p32
      %p160 = pneg %p56
      %p161 = pneg %p53
      %p162 = scmp.lt.s32.totalorder %s14, 1
      %s163 = scalar_select %p162, %s14, 1
      %s164 = smul.addr %s163, 8
      %s165 = scalar_lea.vmem %s2, %s164
      %p166 = pneg %p82
      %p167 = pneg %p79
      %p168 = pneg %p108
      %p169 = pneg %p105
      %p170 = scmp.lt.s32.totalorder %s14, 1
      %s171 = scalar_select %p170, %s14, 1
      %s172 = smul.addr %s171, 8
      %s173 = scalar_lea.vmem %s3, %s172
      %s174 = smul.u32 8, %s14
      %p175 = scmp.lt.s32.totalorder %s174, 15
      %s176 = scalar_select %p175, %s174, 15
      %s177 = smul.addr %s176, 8
      %s178 = scalar_lea.vmem %s0, %s177
      %s179 = smul.u32 8, %s14
      %p180 = scmp.lt.s32.totalorder %s14, 1
      %s181 = scalar_select %p180, %s14, 1
      %s182 = smul.addr %s181, 8
      %s183 = scalar_lea.vmem %s2, %s182
      %p184 = scmp.lt.s32.totalorder %s14, 1
      %s185 = scalar_select %p184, %s14, 1
      %s186 = smul.addr %s185, 8
      %s187 = scalar_lea.vmem %s3, %s186
      %v188 = vld [vmem:[%s178] sm:$0xff]
      %v189 = vld [vmem:[%s178 + $0x8] sm:$0xff]
      %v190 = vld [vmem:[%s178 + $0x10] sm:$0xff]
      %v191 = vld [vmem:[%s178 + $0x18] sm:$0xff]
      %v192 = vld [vmem:[%s178 + $0x20] sm:$0xff]
      %v193 = vld [vmem:[%s178 + $0x28] sm:$0xff]
      %v194 = vld [vmem:[%s178 + $0x30] sm:$0xff]
      %v195 = vld [vmem:[%s178 + $0x38] sm:$0xff]
      %v196 = vld [vmem:[%s1] sm:$0xff]
      %v197 = vmul.f32 %v188, %v196
      %v198 = vmul.f32 %v189, %v196
      %v199 = vmul.f32 %v190, %v196
      %v200 = vmul.f32 %v191, %v196
      %v201 = vmul.f32 %v192, %v196
      %v202 = vmul.f32 %v193, %v196
      %v203 = vmul.f32 %v194, %v196
      %v204 = vmul.f32 %v195, %v196
      %vm205 = vcmask 113664
      %v206 = vsel %vm205, %v197, 0.0
      %207 = vadd.xlane.f32.xlu0 %v206
      %v208 = vpop.xlane.xlu0 %207
      %v209 = vsel %vm205, %v198, 0.0
      %210 = vadd.xlane.f32.xlu0 %v209
      %v211 = vpop.xlane.xlu0 %210
      %v212 = vsel %vm205, %v199, 0.0
      %213 = vadd.xlane.f32.xlu0 %v212
      %v214 = vpop.xlane.xlu0 %213
      %v215 = vsel %vm205, %v200, 0.0
      %216 = vadd.xlane.f32.xlu0 %v215
      %v217 = vpop.xlane.xlu0 %216
      %v218 = vsel %vm205, %v201, 0.0
      %219 = vadd.xlane.f32.xlu0 %v218
      %v220 = vpop.xlane.xlu0 %219
      %v221 = vsel %vm205, %v202, 0.0
      %222 = vadd.xlane.f32.xlu0 %v221
      %v223 = vpop.xlane.xlu0 %222
      %v224 = vsel %vm205, %v203, 0.0
      %225 = vadd.xlane.f32.xlu0 %v224
      %v226 = vpop.xlane.xlu0 %225
      %v227 = vsel %vm205, %v204, 0.0
      %228 = vadd.xlane.f32.xlu0 %v227
      %v229 = vpop.xlane.xlu0 %228
      %v230 = vld [vmem:[%s183] sm:$0xff]
      %v231 = vadd.f32 %v230, 1.0
      %v240 = vlaneseq
      %v241 = vand.u32 %v240, 127
      %v242 = vlaneseq
      %v243 = vshrl.u32 %v242, 7
      %v244 = vsub.s32 %v241, %v243
      %v245 = vrot.slane %v208, %v244
      %v246 = vlaneseq
      %v247 = vshrl.u32 %v246, 7
      %v248 = vsub.s32 %v241, %v247
      %v249 = vrot.slane %v211, %v248
      %v250 = vlaneseq
      %v251 = vshrl.u32 %v250, 7
      %v252 = vsub.s32 %v241, %v251
      %v253 = vrot.slane %v214, %v252
      %v254 = vlaneseq
      %v255 = vshrl.u32 %v254, 7
      %v256 = vsub.s32 %v241, %v255
      %v257 = vrot.slane %v217, %v256
      %v258 = vlaneseq
      %v259 = vshrl.u32 %v258, 7
      %v260 = vsub.s32 %v241, %v259
      %v261 = vrot.slane %v220, %v260
      %v262 = vlaneseq
      %v263 = vshrl.u32 %v262, 7
      %v264 = vsub.s32 %v241, %v263
      %v265 = vrot.slane %v223, %v264
      %v266 = vlaneseq
      %v267 = vshrl.u32 %v266, 7
      %v268 = vsub.s32 %v241, %v267
      %v269 = vrot.slane %v226, %v268
      %v270 = vlaneseq
      %v271 = vshrl.u32 %v270, 7
      %v272 = vsub.s32 %v241, %v271
      %v273 = vrot.slane %v229, %v272
      %vm274 = vcmask 1041409
      %v275 = vsel %vm274, %v249, %v245
      %vm276 = vcmask 1042434
      %v277 = vsel %vm276, %v253, %v275
      %vm278 = vcmask 1043459
      %v279 = vsel %vm278, %v257, %v277
      %vm280 = vcmask 1044484
      %v281 = vsel %vm280, %v261, %v279
      %vm282 = vcmask 1045509
      %v283 = vsel %vm282, %v265, %v281
      %vm284 = vcmask 1046534
      %v285 = vsel %vm284, %v269, %v283
      %vm286 = vcmask 1047559
      %v287 = vsel %vm286, %v273, %v285
      %v289 = vadd.f32 %v231, %v287
      %v290 = vlog2.pop %v289
      %v291 = vmul.f32 %v290, 0.6931472
      %vm292 = vcmask 64512
      %293 = vst.msk [vmem:[%s187] sm:$0xff] %vm292, %v291
      %p294 = scmp.lt.s32.totalorder %s14, 1
      %s295 = scalar_select %p294, %s14, 1
      %s296 = smul.addr %s295, 8
      %s297 = scalar_lea.vmem %s3, %s296
      // Predicated region
      $region33: #{tpu_custom_call.1} parent=31 // pred_check
        %p298 = pneg %p105
      $region34: #{tpu_custom_call.1} parent=31 // pred_check_branch
        %300 = sbr.rel (%p298) target = $region36
      $region35: #{tpu_custom_call.1} parent=31 // pred_region
        _
      $region36: #{tpu_custom_call.1} parent=31 // pred_fallthru
        _
    $region32: #{tpu_custom_call.1} parent=5 // pred_fallthru
      _
    %p301 = scmp.le.s32.totalorder 2, %s9
    // Predicated region
    $region37: #{tpu_custom_call.1} parent=5 // pred_check
      %p302 = pneg %p301
    $region38: #{tpu_custom_call.1} parent=5 // pred_check_branch
      %304 = sbr.rel (%p302) target = $region40
    $region39: #{tpu_custom_call.1} parent=5 // pred_region
      %s305 = ssub.s32 %s9, 2
      // Predicated region
      $region41: #{tpu_custom_call.1} parent=39 // pred_check
        %p306 = pneg %p111
      $region42: #{tpu_custom_call.1} parent=39 // pred_check_branch
        %308 = sbr.rel (%p306) target = $region44
      $region43: #{tpu_custom_call.1} parent=39 // pred_region
        %p309 = scmp.lt.s32.totalorder %s15, 1
        %s310 = scalar_select %p309, %s15, 1
        %s311 = smul.addr %s310, 8
        %s312 = scalar_lea.vmem %s3, %s311
      $region44: #{tpu_custom_call.1} parent=39 // pred_fallthru
        _
    $region40: #{tpu_custom_call.1} parent=5 // pred_fallthru
      _
  $region6: #{tpu_custom_call.1} parent=0 // loop_footer
    %s13 = sadd.s32 1, %s9
  $region7: #{tpu_custom_call.1} parent=0 // loop_footer_branch
    %8 = sbr.rel target = $region3
  $region8: #{tpu_custom_call.1} parent=0 // loop_exit
    _

</llo_original>
